<compile_context>
chip_gen: v7x
topology: tpu7x:2x2x1
jax: 0.10.0
libtpu: 0.0.40
codegen_flags: <defaults>
</compile_context>

<pallas_src>
import functools

import jax
import jax.numpy as jnp
from jax.experimental import pallas as pl
from jax.experimental.pallas import tpu as pltpu


def _num_tensorcores():
    """Best-effort TensorCore-per-chip count (2 on v7x-class parts, else 1)."""
    try:
        kind = (jax.devices()[0].device_kind or "").lower()
    except Exception:
        return 1
    if "v7" in kind or "tpu7" in kind:
        return 2
    return 1


def _x_block_spec(block_shape, index_map, buffer_count):
    """x BlockSpec with deeper input pipelining (falls back to default)."""
    if buffer_count > 2:
        try:
            return pl.BlockSpec(block_shape, index_map,
                                pipeline_mode=pl.Buffered(buffer_count))
        except TypeError:
            pass
    return pl.BlockSpec(block_shape, index_map)


def _accumulate(x_ref, acc_ref, valid, t_tile):
    """Sum this sequence tile into acc_ref, masking only when needed."""

    @pl.when(valid >= t_tile)
    def _():
        # Hot path: full tile, no mask, widening sum straight into f32.
        acc_ref[...] += jnp.sum(x_ref[...], axis=1, dtype=jnp.float32)

    @pl.when(jnp.logical_and(valid > 0, valid < t_tile))
    def _():
        # Last (partial) tile of the sequence: zero the out-of-range rows.
        row = jax.lax.broadcasted_iota(jnp.int32, (1, t_tile, 1), 1)
        xm = jnp.where(row < valid, x_ref[...], jnp.zeros((), x_ref.dtype))
        acc_ref[...] += jnp.sum(xm, axis=1, dtype=jnp.float32)
    # valid <= 0 (clamped out-of-range grid step): skip entirely.


def _pool_linear_kernel(x_ref, w_ref, b_ref, o_ref, acc_ref, *,
                        seq_len, t_tile, inv_seq_len):
    """Single-slice path: streaming mean over T fused with the Linear head.

    x_ref: (B, t_tile, D) sequence tile; w_ref: (D, C); b_ref: (1, C);
    o_ref: (B, C) logits; acc_ref: (B, D) f32 scratch accumulator.
    """
    # TODO(synk): training-mode dropout (stateful RNG mask) not implemented;
    # dropout is identity at inference time.
    t = pl.program_id(0)

    @pl.when(t == 0)
    def _():
        acc_ref[...] = jnp.zeros_like(acc_ref)

    valid = seq_len - t * t_tile
    _accumulate(x_ref, acc_ref, valid, t_tile)

    @pl.when(t == pl.num_programs(0) - 1)
    def _():
        pooled = acc_ref[...] * inv_seq_len                      # (B, D) f32 mean
        logits = jnp.dot(pooled, w_ref[...].astype(jnp.float32),
                         preferred_element_type=jnp.float32)
        logits = logits + b_ref[...].astype(jnp.float32)
        o_ref[...] = logits.astype(o_ref.dtype)


def _pool_partial_kernel(x_ref, o_ref, acc_ref, *,
                         seq_len, t_tile, blocks_per_part):
    """Multi-slice path: per-slice partial sums over T (combined in XLA).

    x_ref: (B, t_tile, D) tile; o_ref: (1, B, D) f32 partial sum for this
    slice; acc_ref: (B, D) f32 scratch accumulator.
    """
    p = pl.program_id(0)        # parallel slice (megacore axis on v7x)
    t = pl.program_id(1)        # sequence-tile index within the slice

    @pl.when(t == 0)
    def _():
        acc_ref[...] = jnp.zeros_like(acc_ref)

    g = p * blocks_per_part + t
    valid = seq_len - g * t_tile
    _accumulate(x_ref, acc_ref, valid, t_tile)

    @pl.when(t == pl.num_programs(1) - 1)
    def _():
        o_ref[...] = acc_ref[...][None, :, :]


def accent_classifier_forward(x, w, b, *, t_tile=None, num_parallel=None,
                              x_window_bytes=8 * 1024 * 1024, buffer_count=3):
    """x: (B, T, D), w: (D, C), b: (C,)  ->  (B, C) logits."""
    B, T, D = x.shape
    C = w.shape[1]
    out_dtype = jnp.result_type(x.dtype, w.dtype)   # keep fp32 head in fp32

    itemsize = jnp.dtype(x.dtype).itemsize
    pack = {4: 8, 2: 16, 1: 32}.get(itemsize, 8)    # sublane packing for t_tile
    d_pad = -(-D // 128) * 128                       # lane padding of last dim

    if t_tile is None:
        # Per-buffer tile budget; actual VMEM use ~= buffer_count * this.
        bytes_per_row = max(1, B * d_pad * itemsize)
        t_tile = x_window_bytes // bytes_per_row
        t_tile = max(pack, (t_tile // pack) * pack)
        t_tile = min(t_tile, 2048)                   # sane upper cap
        t_max = -(-T // pack) * pack                 # T rounded up to packing
        t_tile = min(t_tile, t_max)
    else:
        if t_tile % pack != 0:
            raise ValueError(
                f"t_tile must be a multiple of {pack} for dtype {x.dtype}")

    total_blocks = pl.cdiv(T, t_tile)
    if num_parallel is None:
        num_parallel = _num_tensorcores()
    P = max(1, min(num_parallel, total_blocks))
    blocks_per_part = pl.cdiv(total_blocks, P)
    buf = max(2, min(buffer_count, blocks_per_part))

    # Explicit scoped-VMEM budget (v5e defaults to only 16 MiB): buffered x
    # tiles + accumulator + (possibly lane-padded) weight/bias/output residents
    # + slack.  Clamped well under v7x's 64 MiB per-TC physical VMEM.
    c_pad = -(-C // 128) * 128
    x_tile_bytes = B * t_tile * d_pad * itemsize
    acc_bytes = max(B, 8) * d_pad * 4
    wb_bytes = 2 * ((-(-D // 8) * 8) * c_pad * 4 + 8 * c_pad * 4)
    out_bytes = 2 * (P * max(B, 8) * d_pad * 4 + max(B, 8) * c_pad * 4)
    vmem_limit = buf * x_tile_bytes + acc_bytes + wb_bytes + out_bytes + (2 << 20)
    vmem_limit = int(min(max(vmem_limit, 4 << 20), 60 << 20))

    xbytes = B * T * D * itemsize

    if P == 1:
        # Single kernel: streaming mean fused with the Linear head.
        kernel = functools.partial(_pool_linear_kernel, seq_len=T,
                                   t_tile=t_tile, inv_seq_len=1.0 / float(T))
        b2 = b.reshape(1, C)
        logits = pl.pallas_call(
            kernel,
            out_shape=jax.ShapeDtypeStruct((B, C), out_dtype),
            grid_spec=pltpu.PrefetchScalarGridSpec(
                num_scalar_prefetch=0,
                grid=(total_blocks,),
                in_specs=[
                    _x_block_spec((B, t_tile, D), lambda t: (0, t, 0), buf),
                    pl.BlockSpec((D, C), lambda t: (0, 0)),
                    pl.BlockSpec((1, C), lambda t: (0, 0)),
                ],
                out_specs=pl.BlockSpec((B, C), lambda t: (0, 0)),
                scratch_shapes=[pltpu.VMEM((B, D), jnp.float32)],
            ),
            compiler_params=pltpu.CompilerParams(
                dimension_semantics=("arbitrary",),
                vmem_limit_bytes=vmem_limit,
            ),
            cost_estimate=pl.CostEstimate(
                flops=int(2 * B * T * D + 2 * B * D * C),
                transcendentals=0,
                bytes_accessed=int(xbytes + D * C * 4 + C * 4 + B * C * 4),
            ),
        )(x, w, b2)
        return logits

    # Multi-slice path (two TensorCores on v7x): per-slice partial sums in the
    # kernel, tiny combine + Linear in plain XLA.
    kernel = functools.partial(_pool_partial_kernel, seq_len=T, t_tile=t_tile,
                               blocks_per_part=blocks_per_part)
    partials = pl.pallas_call(
        kernel,
        out_shape=jax.ShapeDtypeStruct((P, B, D), jnp.float32),
        grid_spec=pltpu.PrefetchScalarGridSpec(
            num_scalar_prefetch=0,
            grid=(P, blocks_per_part),
            in_specs=[
                _x_block_spec(
                    (B, t_tile, D),
                    # Clamp so out-of-range tiles (skipped in-kernel) still map
                    # to a valid block; clamped index == previous step's index
                    # so the DMA is elided.
                    lambda p, t: (0,
                                  jnp.minimum(p * blocks_per_part + t,
                                              total_blocks - 1),
                                  0),
                    buf),
            ],
            out_specs=pl.BlockSpec((1, B, D), lambda p, t: (p, 0, 0)),
            scratch_shapes=[pltpu.VMEM((B, D), jnp.float32)],
        ),
        compiler_params=pltpu.CompilerParams(
            dimension_semantics=("parallel", "arbitrary"),
            vmem_limit_bytes=vmem_limit,
        ),
        cost_estimate=pl.CostEstimate(
            flops=int(2 * B * T * D),
            transcendentals=0,
            bytes_accessed=int(xbytes + P * B * D * 4),
        ),
    )(x)

    pooled = jnp.sum(partials, axis=0) * (1.0 / float(T))            # (B, D) f32
    logits = pooled @ w.astype(jnp.float32) + b.astype(jnp.float32)  # (B, C)
    return logits.astype(out_dtype)


if __name__ == "__main__":
    # Small shapes consistent with the module: batch=2, seq=16, hidden=32, classes=2.
    B, T, D, C = 2, 16, 32, 2

    key = jax.random.PRNGKey(0)
    kx, kw, kb = jax.random.split(key, 3)

    x = jax.random.normal(kx, (B, T, D), dtype=jnp.float32)

    # Deterministic Linear init (matches nn.Linear's U(-1/sqrt(D), 1/sqrt(D)) scheme).
    bound = 1.0 / (D ** 0.5)
    w = jax.random.uniform(kw, (D, C), minval=-bound, maxval=bound, dtype=jnp.float32)
    b = jax.random.uniform(kb, (C,), minval=-bound, maxval=bound, dtype=jnp.float32)

    out = accent_classifier_forward(x, w, b)
    out = jax.block_until_ready(out)
    ref = jnp.mean(x, axis=1) @ w + b
    assert out.shape == (B, C)
    assert jnp.allclose(out, ref, atol=1e-5, rtol=1e-5)

    # Non-divisible sequence length, multiple tiles, fused epilogue (P == 1):
    # exercises the masked last tile + unmasked hot path.
    T2 = 40
    x2 = jax.random.normal(kx, (B, T2, D), dtype=jnp.float32)
    out2 = jax.block_until_ready(
        accent_classifier_forward(x2, w, b, t_tile=16, num_parallel=1))
    ref2 = jnp.mean(x2, axis=1) @ w + b
    assert jnp.allclose(out2, ref2, atol=1e-5, rtol=1e-5)

    # Two-slice (megacore-style) partial-sum path: exercises the clamped
    # out-of-range tile skip and the XLA combine epilogue.
    out3 = jax.block_until_ready(
        accent_classifier_forward(x2, w, b, t_tile=16, num_parallel=2))
    assert jnp.allclose(out3, ref2, atol=1e-5, rtol=1e-5)

    print("KERNEL_OK")
</pallas_src>

<mosaic_0001>
module attributes {stable_mosaic.version = 11 : i64} {
  func.func @_pool_linear_kernel(%arg0: i32, %arg1: memref<2x16x32xf32, #tpu.memory_space<vmem>>, %arg2: memref<32x2xf32, #tpu.memory_space<vmem>>, %arg3: memref<1x2xf32, #tpu.memory_space<vmem>>, %arg4: memref<2x2xf32, #tpu.memory_space<vmem>>, %arg5: memref<2x32xf32, #tpu.memory_space<vmem>>) attributes {dimension_semantics = [#tpu.dimension_semantics<arbitrary>], iteration_bounds = array<i64: 1>, scalar_prefetch = 0 : i64, scratch_operands = 1 : i64, tpu.core_type = #tpu.core_type<tc>, window_params = [{transform_indices = @transform_0, window_bounds = array<i64: 2, 16, 32>}, {pipeline_mode = #tpu.pipeline_mode<synchronous>, transform_indices = @transform_1, window_bounds = array<i64: 32, 2>}, {pipeline_mode = #tpu.pipeline_mode<synchronous>, transform_indices = @transform_2, window_bounds = array<i64: 1, 2>}, {pipeline_mode = #tpu.pipeline_mode<synchronous>, transform_indices = @transform_3, window_bounds = array<i64: 2, 2>}]} {
    %c0_i32 = arith.constant 0 : i32
    %0 = arith.cmpi eq, %arg0, %c0_i32 : i32
    %1 = arith.extui %0 : i1 to i32
    %c0_i32_0 = arith.constant 0 : i32
    %2 = arith.cmpi ne, %1, %c0_i32_0 : i32
    scf.if %2 {
      %cst = arith.constant 0.000000e+00 : f32
      %16 = vector.broadcast %cst : f32 to vector<2x32xf32>
      %c0 = arith.constant 0 : index
      %c0_9 = arith.constant 0 : index
      %17 = vector.load %arg5[%c0, %c0_9] : memref<2x32xf32, #tpu.memory_space<vmem>>, vector<2x32xf32>
      tpu.vector_store %arg5[%c0, %c0_9], %16 {strides = array<i32>} : memref<2x32xf32, #tpu.memory_space<vmem>>, vector<2x32xf32>,
    } else {
    }
    %c16_i32 = arith.constant 16 : i32
    %3 = arith.muli %arg0, %c16_i32 : i32
    %c16_i32_1 = arith.constant 16 : i32
    %4 = arith.subi %c16_i32_1, %3 : i32
    %c16_i32_2 = arith.constant 16 : i32
    %5 = arith.cmpi sge, %4, %c16_i32_2 : i32
    %6 = arith.extui %5 : i1 to i32
    %c0_i32_3 = arith.constant 0 : i32
    %7 = arith.cmpi ne, %6, %c0_i32_3 : i32
    scf.if %7 {
      %c0 = arith.constant 0 : index
      %c0_9 = arith.constant 0 : index
      %16 = vector.load %arg5[%c0, %c0_9] : memref<2x32xf32, #tpu.memory_space<vmem>>, vector<2x32xf32>
      %c0_10 = arith.constant 0 : index
      %c0_11 = arith.constant 0 : index
      %c0_12 = arith.constant 0 : index
      %17 = vector.load %arg1[%c0_10, %c0_11, %c0_12] : memref<2x16x32xf32, #tpu.memory_space<vmem>>, vector<2x16x32xf32>
      %cst = arith.constant dense<0.000000e+00> : vector<2x32xf32>
      %18 = vector.multi_reduction <add>, %17, %cst [1] : vector<2x16x32xf32> to vector<2x32xf32>
      %19 = arith.addf %16, %18 : vector<2x32xf32>
      %c0_13 = arith.constant 0 : index
      %c0_14 = arith.constant 0 : index
      %20 = vector.load %arg5[%c0_13, %c0_14] : memref<2x32xf32, #tpu.memory_space<vmem>>, vector<2x32xf32>
      tpu.vector_store %arg5[%c0_13, %c0_14], %19 {strides = array<i32>} : memref<2x32xf32, #tpu.memory_space<vmem>>, vector<2x32xf32>,
    } else {
    }
    %c0_i32_4 = arith.constant 0 : i32
    %8 = arith.cmpi sgt, %4, %c0_i32_4 : i32
    %c16_i32_5 = arith.constant 16 : i32
    %9 = arith.cmpi slt, %4, %c16_i32_5 : i32
    %10 = arith.andi %8, %9 : i1
    %11 = arith.extui %10 : i1 to i32
    %c0_i32_6 = arith.constant 0 : i32
    %12 = arith.cmpi ne, %11, %c0_i32_6 : i32
    scf.if %12 {
      %16 = tpu.iota {dimensions = array<i32: 1>} : vector<1x16x1xi32>
      %17 = vector.broadcast %4 : i32 to vector<1x16x1xi32>
      %18 = arith.cmpi slt, %16, %17 : vector<1x16x1xi32>
      %c0 = arith.constant 0 : index
      %c0_9 = arith.constant 0 : index
      %c0_10 = arith.constant 0 : index
      %19 = vector.load %arg1[%c0, %c0_9, %c0_10] : memref<2x16x32xf32, #tpu.memory_space<vmem>>, vector<2x16x32xf32>
      %cst = arith.constant 0.000000e+00 : f32
      %20 = vector.shape_cast %18 : vector<1x16x1xi1> to vector<1x16x1xi1>
      %21 = vector.broadcast %20 : vector<1x16x1xi1> to vector<2x16x32xi1>
      %22 = vector.broadcast %cst : f32 to vector<2x16x32xf32>
      %23 = arith.select %21, %19, %22 : vector<2x16x32xi1>, vector<2x16x32xf32>
      %c0_11 = arith.constant 0 : index
      %c0_12 = arith.constant 0 : index
      %24 = vector.load %arg5[%c0_11, %c0_12] : memref<2x32xf32, #tpu.memory_space<vmem>>, vector<2x32xf32>
      %cst_13 = arith.constant dense<0.000000e+00> : vector<2x32xf32>
      %25 = vector.multi_reduction <add>, %23, %cst_13 [1] : vector<2x16x32xf32> to vector<2x32xf32>
      %26 = arith.addf %24, %25 : vector<2x32xf32>
      %c0_14 = arith.constant 0 : index
      %c0_15 = arith.constant 0 : index
      %27 = vector.load %arg5[%c0_14, %c0_15] : memref<2x32xf32, #tpu.memory_space<vmem>>, vector<2x32xf32>
      tpu.vector_store %arg5[%c0_14, %c0_15], %26 {strides = array<i32>} : memref<2x32xf32, #tpu.memory_space<vmem>>, vector<2x32xf32>,
    } else {
    }
    %c0_i32_7 = arith.constant 0 : i32
    %13 = arith.cmpi eq, %arg0, %c0_i32_7 : i32
    %14 = arith.extui %13 : i1 to i32
    %c0_i32_8 = arith.constant 0 : i32
    %15 = arith.cmpi ne, %14, %c0_i32_8 : i32
    scf.if %15 {
      %c0 = arith.constant 0 : index
      %c0_9 = arith.constant 0 : index
      %16 = vector.load %arg5[%c0, %c0_9] : memref<2x32xf32, #tpu.memory_space<vmem>>, vector<2x32xf32>
      %cst = arith.constant 6.250000e-02 : f32
      %17 = vector.broadcast %cst : f32 to vector<2x32xf32>
      %18 = arith.mulf %16, %17 : vector<2x32xf32>
      %c0_10 = arith.constant 0 : index
      %c0_11 = arith.constant 0 : index
      %19 = vector.load %arg2[%c0_10, %c0_11] : memref<32x2xf32, #tpu.memory_space<vmem>>, vector<32x2xf32>
      %cst_12 = arith.constant dense<0.000000e+00> : vector<2x2xf32>
      %20 = tpu.matmul %18, %19, %cst_12 {dimension_numbers = #tpu.dot_dimension_numbers<[1], [0], [0], [1], [0, 0, 1, 1], [], []>} : vector<2x32xf32>, vector<32x2xf32>, vector<2x2xf32> -> vector<2x2xf32>
      %c0_13 = arith.constant 0 : index
      %c0_14 = arith.constant 0 : index
      %21 = vector.load %arg3[%c0_13, %c0_14] : memref<1x2xf32, #tpu.memory_space<vmem>>, vector<1x2xf32>
      %22 = vector.broadcast %21 : vector<1x2xf32> to vector<2x2xf32>
      %23 = arith.addf %20, %22 : vector<2x2xf32>
      %c0_15 = arith.constant 0 : index
      %c0_16 = arith.constant 0 : index
      %24 = vector.load %arg4[%c0_15, %c0_16] : memref<2x2xf32, #tpu.memory_space<vmem>>, vector<2x2xf32>
      tpu.vector_store %arg4[%c0_15, %c0_16], %23 {strides = array<i32>} : memref<2x2xf32, #tpu.memory_space<vmem>>, vector<2x2xf32>,
    } else {
    }
    return
  }
  func.func @transform_0(%arg0: i32) -> (i32, i32, i32) {
    %c0_i32 = arith.constant 0 : i32
    %c0_i32_0 = arith.constant 0 : i32
    %c0_i32_1 = arith.constant 0 : i32
    return %c0_i32, %arg0, %c0_i32_0 : i32, i32, i32
  }
  func.func @transform_1(%arg0: i32) -> (i32, i32) {
    %c0_i32 = arith.constant 0 : i32
    %c0_i32_0 = arith.constant 0 : i32
    %c0_i32_1 = arith.constant 0 : i32
    return %c0_i32, %c0_i32_0 : i32, i32
  }
  func.func @transform_2(%arg0: i32) -> (i32, i32) {
    %c0_i32 = arith.constant 0 : i32
    %c0_i32_0 = arith.constant 0 : i32
    %c0_i32_1 = arith.constant 0 : i32
    return %c0_i32, %c0_i32_0 : i32, i32
  }
  func.func @transform_3(%arg0: i32) -> (i32, i32) {
    %c0_i32 = arith.constant 0 : i32
    %c0_i32_0 = arith.constant 0 : i32
    %c0_i32_1 = arith.constant 0 : i32
    return %c0_i32, %c0_i32_0 : i32, i32
  }
}

</mosaic_0001>

<llo_original>
// kernel: tpu_custom_call.1
$region0: #{tpu_custom_call.1}
  #allocation0 [shape = 'u32[]', space=smem, size = 0x4, offset = 0x4, fixed_abs, tag = 'smem constant byte address 0x4 - core index']
  #allocation1 [shape = 'u32[144,128]{1,0:T(1,128)}', space=vmem, size = 0x12000, scoped, tag = 'internal scratch']
  #allocation2 [shape = 'f32[2,32]{1,0:T(2,128)}', space=vmem, size = 0x400, scoped, tag = 'scratch operand']
  %s0 = inlined_call_operand.vmem [shape: f32[2,16,32], index: 0, kind: input, shape index: {}]
  %s1 = inlined_call_operand.vmem [shape: f32[32,2], index: 1, kind: input, shape index: {}]
  %s2 = inlined_call_operand.vmem [shape: f32[1,2], index: 2, kind: input, shape index: {}]
  %s3 = inlined_call_operand.hbm [shape: f32[2,2], index: 3, kind: output, shape index: {}]
  %s4 = sld [smem:[#allocation0]]
  $region38: #{tpu_custom_call.1} parent=0
    _
  %s6 = ssub.s32 1, %s4
  %s7 = scalar_select 0, %s6, %s4
  $region1: #{tpu_custom_call.1} parent=0
    #allocation3 [shape = 'u8[1024]{0}', space=vmem, size = 0x400, scoped, tag = 'output window, operand 0, single buffered']
    #allocation4 [shape = 's32[1]{0}', space=sflag, size = 0x4, scoped, tag = 'scoped memory for tpu_custom_call.1']
    %8 = vsyncpa [#allocation4], 0
    // Predicated region
    $region2: #{tpu_custom_call.1} parent=1 // pred_check
      _
    $region3: #{tpu_custom_call.1} parent=1 // pred_check_branch
      %10 = sbr.rel (0) target = $region5
    $region4: #{tpu_custom_call.1} parent=1 // pred_region
      _
    $region5: #{tpu_custom_call.1} parent=1 // pred_fallthru
      _
    // Predicated region
    $region6: #{tpu_custom_call.1} parent=1 // pred_check
      _
    $region7: #{tpu_custom_call.1} parent=1 // pred_check_branch
      %12 = sbr.rel (0) target = $region9
    $region8: #{tpu_custom_call.1} parent=1 // pred_region
      _
    $region9: #{tpu_custom_call.1} parent=1 // pred_fallthru
      _
    // Predicated region
    $region10: #{tpu_custom_call.1} parent=1 // pred_check
      _
    $region11: #{tpu_custom_call.1} parent=1 // pred_check_branch
      %14 = sbr.rel (0) target = $region13
    $region12: #{tpu_custom_call.1} parent=1 // pred_region
      _
    $region13: #{tpu_custom_call.1} parent=1 // pred_fallthru
      _
    %p15 = scmp.eq.s32.totalorder 0, 0
    // Predicated region
    $region14: #{tpu_custom_call.1} parent=1 // pred_check
      %p16 = pneg %p15
    $region15: #{tpu_custom_call.1} parent=1 // pred_check_branch
      %18 = sbr.rel (%p16) target = $region17
    $region16: #{tpu_custom_call.1} parent=1 // pred_region
      %vm19 = vcmask 254976
      %20 = vst.msk [vmem:[#allocation2] sm:$0x3] %vm19, 0.0
    $region17: #{tpu_custom_call.1} parent=1 // pred_fallthru
      _
    %s21 = smul.u32 0, 16
    %s22 = ssub.s32 16, %s21
    %p23 = scmp.ge.s32.totalorder %s22, 16
    // Predicated region
    $region18: #{tpu_custom_call.1} parent=1 // pred_check
      %p24 = pneg %p23
    $region19: #{tpu_custom_call.1} parent=1 // pred_check_branch
      %26 = sbr.rel (%p24) target = $region21
    $region20: #{tpu_custom_call.1} parent=1 // pred_region
      %v27 = vld [vmem:[#allocation2] sm:$0x3]
      %v28 = vld [vmem:[%s0] sm:$0xff]
      %v29 = vld [vmem:[%s0 + $0x8] sm:$0xff]
      %v30 = vld [vmem:[%s0 + $0x10] sm:$0xff]
      %v31 = vld [vmem:[%s0 + $0x18] sm:$0xff]
      %vm32 = vcmask 261120
      %v33 = vsel %vm32, %v28, 0.0
      %v34 = vsel %vm32, %v29, 0.0
      %v35 = vadd.f32 %v33, %v34
      %v36 = vrot.slane %v35, 4
      %v37 = vadd.f32 %v35, %v36
      %v38 = vrot.slane %v37, 2
      %v39 = vadd.f32 %v37, %v38
      %v40 = vrot.slane %v39, 1
      %v41 = vadd.f32 %v39, %v40
      %v42 = vsel %vm32, %v30, 0.0
      %v43 = vsel %vm32, %v31, 0.0
      %v44 = vadd.f32 %v42, %v43
      %v45 = vrot.slane %v44, 4
      %v46 = vadd.f32 %v44, %v45
      %v47 = vrot.slane %v46, 2
      %v48 = vadd.f32 %v46, %v47
      %v49 = vrot.slane %v48, 1
      %v50 = vadd.f32 %v48, %v49
      %vm53 = vcmask 1041409
      %v54 = vsel %vm53, %v50, %v41
      %v56 = vadd.f32 %v27, %v54
      %vm57 = vcmask 254976
      %58 = vst.msk [vmem:[#allocation2] sm:$0x3] %vm57, %v56
    $region21: #{tpu_custom_call.1} parent=1 // pred_fallthru
      _
    %p59 = scmp.gt.s32.totalorder %s22, 0
    %p60 = scmp.lt.s32.totalorder %s22, 16
    %p61 = pnand %p59, %p60
    %p62 = pneg %p61
    // Predicated region
    $region22: #{tpu_custom_call.1} parent=1 // pred_check
      _
    $region23: #{tpu_custom_call.1} parent=1 // pred_check_branch
      %64 = sbr.rel (%p61) target = $region25
    $region24: #{tpu_custom_call.1} parent=1 // pred_region
      %v65 = vlaneseq
      %v66 = vshrl.u32 %v65, 7
      %v67 = vadd.s32 %v66, 8
      %v68 = vstv %s22
      %vm69 = vcmp.lt.s32.totalorder %v66, %v68
      %vm70 = vcmp.lt.s32.totalorder %v67, %v68
      %v71 = vld [vmem:[%s0] sm:$0xff]
      %v72 = vld [vmem:[%s0 + $0x8] sm:$0xff]
      %v73 = vld [vmem:[%s0 + $0x10] sm:$0xff]
      %v74 = vld [vmem:[%s0 + $0x18] sm:$0xff]
      %v75 = vsel %vm69, 1, 0
      %v76 = vsel %vm70, 1, 0
      %vm77 = vcmp.eq.s32.totalorder %v75, 1
      %vm78 = vcmp.eq.s32.totalorder %v76, 1
      %v79 = vsel %vm77, %v71, 0.0
      %v80 = vsel %vm78, %v72, 0.0
      %v81 = vsel %vm77, %v73, 0.0
      %v82 = vsel %vm78, %v74, 0.0
      %v83 = vld [vmem:[#allocation2] sm:$0x3]
      %vm84 = vcmask 261120
      %v85 = vsel %vm84, %v79, 0.0
      %v86 = vsel %vm84, %v80, 0.0
      %v87 = vadd.f32 %v85, %v86
      %v88 = vrot.slane %v87, 4
      %v89 = vadd.f32 %v87, %v88
      %v90 = vrot.slane %v89, 2
      %v91 = vadd.f32 %v89, %v90
      %v92 = vrot.slane %v91, 1
      %v93 = vadd.f32 %v91, %v92
      %v94 = vsel %vm84, %v81, 0.0
      %v95 = vsel %vm84, %v82, 0.0
      %v96 = vadd.f32 %v94, %v95
      %v97 = vrot.slane %v96, 4
      %v98 = vadd.f32 %v96, %v97
      %v99 = vrot.slane %v98, 2
      %v100 = vadd.f32 %v98, %v99
      %v101 = vrot.slane %v100, 1
      %v102 = vadd.f32 %v100, %v101
      %vm105 = vcmask 1041409
      %v106 = vsel %vm105, %v102, %v93
      %v108 = vadd.f32 %v83, %v106
      %vm109 = vcmask 254976
      %110 = vst.msk [vmem:[#allocation2] sm:$0x3] %vm109, %v108
    $region25: #{tpu_custom_call.1} parent=1 // pred_fallthru
      _
    // Predicated region
    $region26: #{tpu_custom_call.1} parent=1 // pred_check
      %p111 = pneg %p15
    $region27: #{tpu_custom_call.1} parent=1 // pred_check_branch
      %113 = sbr.rel (%p111) target = $region29
    $region28: #{tpu_custom_call.1} parent=1 // pred_region
      %v114 = vld [vmem:[#allocation2] sm:$0x3]
      %v115 = vmul.f32 %v114, 0.0625
      %v116 = vld [vmem:[%s1] sm:$0xff]
      %v117 = vld [vmem:[%s1 + $0x8] sm:$0xff]
      %v118 = vld [vmem:[%s1 + $0x10] sm:$0xff]
      %v119 = vld [vmem:[%s1 + $0x18] sm:$0xff]
      %v120 = vld [vmem:[%s2] sm:$0x1]
      %v122 = vlaneseq
      %v123 = vshrl.u32 %v122, 7
      %v124 = vsub.s32 0, %v123
      %v125 = vrot.slane %v120, %v124
      %vm127 = vcmask 261120
      %v129 = vsel %vm127, %v115, 0
      %131 = vmatprep.subr.mxu0 0.0
      %132 = vmatpush1.msra.mxu0 %v116
      %133 = vmatprep.subr.mxu0 0.0
      %134 = vmatpush1.msra.mxu0 %v117
      %135 = vmatprep.subr.mxu0 0.0
      %136 = vmatpush1.msra.mxu0 %v118
      %137 = vmatprep.subr.mxu0 0.0
      %138 = vmatpush1.msra.mxu0 %v119
      %139 = vmatprep.subr.mxu0 0.0
      %140 = vmatpush1.msra.mxu0 0.0
      %141 = vmatprep.subr.mxu0 0.0
      %142 = vmatpush1.msra.mxu0 0.0
      %143 = vmatprep.subr.mxu0 0.0
      %144 = vmatpush1.msra.mxu0 0.0
      %145 = vmatprep.subr.mxu0 0.0
      %146 = vmatpush1.msra.mxu0 0.0
      %147 = vmatprep.subr.mxu0 0.0
      %148 = vmatpush1.msra.mxu0 0.0
      %149 = vmatprep.subr.mxu0 0.0
      %150 = vmatpush1.msra.mxu0 0.0
      %151 = vmatprep.subr.mxu0 0.0
      %152 = vmatpush1.msra.mxu0 0.0
      %153 = vmatprep.subr.mxu0 0.0
      %154 = vmatpush1.msra.mxu0 0.0
      %155 = vmatprep.subr.mxu0 0.0
      %156 = vmatpush1.msra.mxu0 0.0
      %157 = vmatprep.subr.mxu0 0.0
      %158 = vmatpush1.msra.mxu0 0.0
      %159 = vmatprep.subr.mxu0 0.0
      %160 = vmatpush1.msra.mxu0 0.0
      %161 = vmatprep.subr.mxu0 0.0
      %162 = vmatpush1.msra.mxu0 0.0
      %163 = vmatprep.subr.mxu0 0.0
      %164 = vmatpush1.msra.mxu0 0.0
      %165 = vmatprep.subr.mxu0 0.0
      %166 = vmatpush1.msra.mxu0 0.0
      %167 = vmatprep.subr.mxu0 0.0
      %168 = vmatpush1.msra.mxu0 0.0
      %169 = vmatprep.subr.mxu0 0.0
      %170 = vmatpush1.msra.mxu0 0.0
      %171 = vmatprep.subr.mxu0 0.0
      %172 = vmatpush1.msra.mxu0 0.0
      %173 = vmatprep.subr.mxu0 0.0
      %174 = vmatpush1.msra.mxu0 0.0
      %175 = vmatprep.subr.mxu0 0.0
      %176 = vmatpush1.msra.mxu0 0.0
      %177 = vmatprep.subr.mxu0 0.0
      %178 = vmatpush1.msra.mxu0 0.0
      %179 = vmatprep.subr.mxu0 0.0
      %180 = vmatpush1.msra.mxu0 0.0
      %181 = vmatprep.subr.mxu0 0.0
      %182 = vmatpush1.msra.mxu0 0.0
      %183 = vmatprep.subr.mxu0 0.0
      %184 = vmatpush1.msra.mxu0 0.0
      %185 = vmatprep.subr.mxu0 0.0
      %186 = vmatpush1.msra.mxu0 0.0
      %187 = vmatprep.subr.mxu0 0.0
      %188 = vmatpush1.msra.mxu0 0.0
      %189 = vmatprep.subr.mxu0 0.0
      %190 = vmatpush1.msra.mxu0 0.0
      %191 = vmatprep.subr.mxu0 0.0
      %192 = vmatpush1.msra.mxu0 0.0
      %193 = vmatprep.subr.mxu0 0.0
      %194 = vmatpush1.msra.mxu0 0.0
      %195 = vmatprep.mubr.f32.mxu0 0.0
      %196 = vmatmul.mubr.f32.gmra.mrb[0].mxu0 %v129
      %v197 = vpop.f32.mrb[0].mxu0
      %v198 = vadd.f32 %v125, %v197
      %v199 = vpop.f32.mrb[0].mxu0
      %200 = vdwg.mxu0
      %vm201 = vcmask 9216
      %202 = vst.msk [vmem:[#allocation3] sm:$0x3] %vm201, %v198
    $region29: #{tpu_custom_call.1} parent=1 // pred_fallthru
      _
    // Predicated region
    $region30: #{tpu_custom_call.1} parent=1 // pred_check
      _
    $region31: #{tpu_custom_call.1} parent=1 // pred_check_branch
      %204 = sbr.rel (0) target = $region33
    $region32: #{tpu_custom_call.1} parent=1 // pred_region
      %s206 = ssub.s32 32, 32
      %207 = vsyncadd [#allocation4], %s206
      %s209 = sshll.u32 [#allocation3], 4
      %s210 = int_to_ptr.vmem [resolvable:$true] %s209
      %212 = dma.vmem_to_hbm [thread:$0]  %s210, 32, %s3, [#allocation4]
    $region33: #{tpu_custom_call.1} parent=1 // pred_fallthru
      _
    // Predicated region
    $region34: #{tpu_custom_call.1} parent=1 // pred_check
      _
    $region35: #{tpu_custom_call.1} parent=1 // pred_check_branch
      %214 = sbr.rel (0) target = $region37
    $region36: #{tpu_custom_call.1} parent=1 // pred_region
      %215 = dma.done [#allocation4], 32
    $region37: #{tpu_custom_call.1} parent=1 // pred_fallthru
      _
    %216 = vsyncpa [#allocation4], 1

</llo_original>
